<compile_context>
chip_gen: v5e
topology: v5e:2x2
jax: 0.10.0
libtpu: 0.0.40
codegen_flags: <defaults>
</compile_context>

<pallas_src>
import jax
import jax.numpy as jnp
import numpy as np
from jax.experimental import pallas as pl
from jax.experimental.pallas import tpu as pltpu


_REDUCE_SPLIT = 2  # shard the pass-1 N reduction across (up to) 2 TensorCores


def spec_fused_kernel(x_ref, ev_ref, scale_ref, w0_ref, o_ref):
    """Fused path: out = x * w0 + U @ ((U^T @ x) * scale), all resident in VMEM."""
    x = x_ref[...]                                    # [N, D]
    ev = ev_ref[...]                                  # [N, M]
    # utx = EigVecs^T @ x without materializing a transpose: contract axis 0.
    utx = jax.lax.dot_general(
        ev, x, dimension_numbers=(((0,), (0,)), ((), ())),
        preferred_element_type=jnp.float32)           # [M, D]
    s = utx * scale_ref[...]                          # [M, D]
    feat = jnp.dot(ev, s, preferred_element_type=jnp.float32)   # [N, D]
    o_ref[...] = (x * w0_ref[...] + feat).astype(o_ref.dtype)


def spec_reduce_kernel(ev_ref, x_ref, utx_ref, acc_ref):
    """Pass 1: partial utx = sum over this shard's N tiles of EigVecs^T @ x."""
    @pl.when(pl.program_id(1) == 0)
    def _():
        acc_ref[...] = jnp.zeros_like(acc_ref)

    acc_ref[...] += jax.lax.dot_general(
        ev_ref[...], x_ref[...],                      # [tile_n, M] x [tile_n, D]
        dimension_numbers=(((0,), (0,)), ((), ())),
        preferred_element_type=jnp.float32)           # -> [M, D]

    @pl.when(pl.program_id(1) == pl.num_programs(1) - 1)
    def _():
        utx_ref[0] = acc_ref[...].astype(utx_ref.dtype)


def spec_expand_kernel(x_ref, ev_ref, s_ref, w0_ref, o_ref):
    """Pass 2 (per N tile): out = x * w0 + EigVecs @ S."""
    feat = jnp.dot(ev_ref[...], s_ref[...],
                   preferred_element_type=jnp.float32)          # [tile_n, D]
    o_ref[...] = (x_ref[...] * w0_ref[...] + feat).astype(o_ref.dtype)


def spec_layer_forward(x, eigvecs, eigvals, weight, *, tile_n=1024,
                       fuse_vmem_bytes=24 << 20):
    """SpecLayer forward.

    x:       [N, D] node features
    eigvecs: [N, M] Laplacian eigenvectors
    eigvals: [M, H] eigenvalue features (H = n_heads)
    weight:  [1, H+1, D] (module parameter) or [H+1, D]
    """
    N, D = x.shape
    M = eigvecs.shape[1]
    H = eigvals.shape[1]
    w = weight.reshape(H + 1, D)
    w0 = w[0:1, :]                                               # [1, D]
    # Tiny [M, H] @ [H, D] done once in XLA: per-(eigenvector, feature) scale.
    scale = jnp.dot(eigvals, w[1:, :],
                    preferred_element_type=jnp.float32)          # [M, D]

    itemsize = np.dtype(x.dtype).itemsize
    fused_bytes = N * (2 * D + M) * itemsize

    # --- fused single-kernel path (x + eigvecs + out resident in VMEM) -------
    if fused_bytes <= fuse_vmem_bytes:
        return pl.pallas_call(
            spec_fused_kernel,
            out_shape=jax.ShapeDtypeStruct((N, D), x.dtype),
            grid=(1,),
            in_specs=[
                pl.BlockSpec((N, D), lambda i: (0, 0)),          # x
                pl.BlockSpec((N, M), lambda i: (0, 0)),          # EigVecs
                pl.BlockSpec((M, D), lambda i: (0, 0)),          # scale
                pl.BlockSpec((1, D), lambda i: (0, 0)),          # w0
            ],
            out_specs=pl.BlockSpec((N, D), lambda i: (0, 0)),
            compiler_params=pltpu.CompilerParams(
                dimension_semantics=("arbitrary",),
                vmem_limit_bytes=48 << 20),
        )(x, eigvecs, scale, w0)

    # --- two-pass tiled path (large N) ---------------------------------------
    assert tile_n % 8 == 0, "tile_n must be a multiple of 8 (sublane granule)"
    pad_unit = _REDUCE_SPLIT * tile_n
    n_pad = pl.cdiv(N, pad_unit) * pad_unit
    if n_pad != N:
        pad = n_pad - N
        x_p = jnp.pad(x, ((0, pad), (0, 0)))          # zero rows: no effect on utx
        ev_p = jnp.pad(eigvecs, ((0, pad), (0, 0)))
    else:
        x_p, ev_p = x, eigvecs
    n_tiles = n_pad // tile_n
    tiles_per_split = n_tiles // _REDUCE_SPLIT

    # Pass 1: partial utx per reduction shard -> [SPLIT, M, D].
    utx_parts = pl.pallas_call(
        spec_reduce_kernel,
        out_shape=jax.ShapeDtypeStruct((_REDUCE_SPLIT, M, D), jnp.float32),
        grid=(_REDUCE_SPLIT, tiles_per_split),
        in_specs=[
            pl.BlockSpec((tile_n, M),
                         lambda c, j: (c * tiles_per_split + j, 0)),  # EigVecs tile
            pl.BlockSpec((tile_n, D),
                         lambda c, j: (c * tiles_per_split + j, 0)),  # x tile
        ],
        out_specs=pl.BlockSpec((1, M, D), lambda c, j: (c, 0, 0)),
        scratch_shapes=[pltpu.VMEM((M, D), jnp.float32)],
        compiler_params=pltpu.CompilerParams(
            dimension_semantics=("parallel", "arbitrary"),
            vmem_limit_bytes=48 << 20),
    )(ev_p, x_p)

    # Tiny finalize in XLA: sum the (<=2) shard partials and apply the scale.
    s = jnp.sum(utx_parts, axis=0) * scale                       # [M, D]

    # Pass 2: out = x * w0 + U @ S, tiled over N (shards across v7x's 2 TCs).
    out = pl.pallas_call(
        spec_expand_kernel,
        out_shape=jax.ShapeDtypeStruct((n_pad, D), x.dtype),
        grid=(n_tiles,),
        in_specs=[
            pl.BlockSpec((tile_n, D), lambda i: (i, 0)),         # x tile
            pl.BlockSpec((tile_n, M), lambda i: (i, 0)),         # EigVecs tile
            pl.BlockSpec((M, D), lambda i: (0, 0)),              # S (resident)
            pl.BlockSpec((1, D), lambda i: (0, 0)),              # w0 (resident)
        ],
        out_specs=pl.BlockSpec((tile_n, D), lambda i: (i, 0)),
        compiler_params=pltpu.CompilerParams(
            dimension_semantics=("parallel",),
            vmem_limit_bytes=48 << 20),
    )(x_p, ev_p, s, w0)
    return out[:N]


def spec_layer_reference(x, eigvecs, eigvals, weight):
    """Pure-JAX fp32 reference mirroring the PyTorch forward exactly."""
    H = eigvals.shape[1]
    w = weight.reshape(H + 1, -1)
    utx = eigvecs.T @ x
    feats = [x]
    for i in range(H):
        feats.append(eigvecs @ (eigvals[:, i:i + 1] * utx))
    feats = jnp.stack(feats, axis=1)                  # [N, H+1, D]
    feats = feats * w[None, :, :]                     # dropout(p=0) is identity
    return jnp.sum(feats, axis=1)                     # norm='none' -> no norm/relu


if __name__ == "__main__":
    key = jax.random.PRNGKey(0)
    k1, k2, k3, k4, k5, k6, k7 = jax.random.split(key, 7)

    # Shapes consistent with the module: N nodes, M eigenvectors, D=dim_out,
    # H=n_heads. weight is the module's [1, H+1, D] parameter.
    N, M, D, H = 256, 16, 32, 4
    x = jax.random.normal(k1, (N, D), dtype=jnp.float32)
    eigvecs, _ = jnp.linalg.qr(jax.random.normal(k2, (N, M), dtype=jnp.float32))
    eigvals = jax.random.uniform(k3, (M, H), dtype=jnp.float32)
    weight = jax.random.normal(k4, (1, H + 1, D), dtype=jnp.float32)

    # 1) Small graph -> fused single-kernel path.
    out = jax.block_until_ready(spec_layer_forward(x, eigvecs, eigvals, weight))
    ref = jax.block_until_ready(spec_layer_reference(x, eigvecs, eigvals, weight))
    np.testing.assert_allclose(np.asarray(out), np.asarray(ref),
                               rtol=2e-2, atol=2e-2)

    # 2) Larger, ragged N -> exercises the tiled two-pass path (zero-padding +
    #    2-way split reduction + parallel expand).
    N2 = 1000
    x2 = jax.random.normal(k5, (N2, D), dtype=jnp.float32)
    ev2, _ = jnp.linalg.qr(jax.random.normal(k6, (N2, M), dtype=jnp.float32))
    evals2 = jax.random.uniform(k7, (M, H), dtype=jnp.float32)
    out2 = jax.block_until_ready(
        spec_layer_forward(x2, ev2, evals2, weight, tile_n=256,
                           fuse_vmem_bytes=0))
    ref2 = jax.block_until_ready(spec_layer_reference(x2, ev2, evals2, weight))
    np.testing.assert_allclose(np.asarray(out2), np.asarray(ref2),
                               rtol=2e-2, atol=2e-2)

    print("KERNEL_OK")
</pallas_src>

<mosaic_0001>
module attributes {stable_mosaic.version = 11 : i64} {
  func.func @spec_fused_kernel(%arg0: i32, %arg1: memref<256x32xf32, #tpu.memory_space<vmem>>, %arg2: memref<256x16xf32, #tpu.memory_space<vmem>>, %arg3: memref<16x32xf32, #tpu.memory_space<vmem>>, %arg4: memref<1x32xf32, #tpu.memory_space<vmem>>, %arg5: memref<256x32xf32, #tpu.memory_space<vmem>>) attributes {dimension_semantics = [#tpu.dimension_semantics<arbitrary>], iteration_bounds = array<i64: 1>, scalar_prefetch = 0 : i64, scratch_operands = 0 : i64, tpu.core_type = #tpu.core_type<tc>, window_params = [{pipeline_mode = #tpu.pipeline_mode<synchronous>, transform_indices = @transform_0, window_bounds = array<i64: 256, 32>}, {pipeline_mode = #tpu.pipeline_mode<synchronous>, transform_indices = @transform_1, window_bounds = array<i64: 256, 16>}, {pipeline_mode = #tpu.pipeline_mode<synchronous>, transform_indices = @transform_2, window_bounds = array<i64: 16, 32>}, {pipeline_mode = #tpu.pipeline_mode<synchronous>, transform_indices = @transform_3, window_bounds = array<i64: 1, 32>}, {pipeline_mode = #tpu.pipeline_mode<synchronous>, transform_indices = @transform_4, window_bounds = array<i64: 256, 32>}]} {
    %c0 = arith.constant 0 : index
    %c0_0 = arith.constant 0 : index
    %0 = vector.load %arg1[%c0, %c0_0] : memref<256x32xf32, #tpu.memory_space<vmem>>, vector<256x32xf32>
    %c0_1 = arith.constant 0 : index
    %c0_2 = arith.constant 0 : index
    %1 = vector.load %arg2[%c0_1, %c0_2] : memref<256x16xf32, #tpu.memory_space<vmem>>, vector<256x16xf32>
    %cst = arith.constant dense<0.000000e+00> : vector<16x32xf32>
    %2 = tpu.matmul %1, %0, %cst {dimension_numbers = #tpu.dot_dimension_numbers<[0], [0], [1], [1], [0, 1, 1, 1], [], []>} : vector<256x16xf32>, vector<256x32xf32>, vector<16x32xf32> -> vector<16x32xf32>
    %c0_3 = arith.constant 0 : index
    %c0_4 = arith.constant 0 : index
    %3 = vector.load %arg3[%c0_3, %c0_4] : memref<16x32xf32, #tpu.memory_space<vmem>>, vector<16x32xf32>
    %4 = arith.mulf %2, %3 : vector<16x32xf32>
    %cst_5 = arith.constant dense<0.000000e+00> : vector<256x32xf32>
    %5 = tpu.matmul %1, %4, %cst_5 {dimension_numbers = #tpu.dot_dimension_numbers<[1], [0], [0], [1], [0, 0, 1, 1], [], []>} : vector<256x16xf32>, vector<16x32xf32>, vector<256x32xf32> -> vector<256x32xf32>
    %c0_6 = arith.constant 0 : index
    %c0_7 = arith.constant 0 : index
    %6 = vector.load %arg4[%c0_6, %c0_7] : memref<1x32xf32, #tpu.memory_space<vmem>>, vector<1x32xf32>
    %7 = vector.broadcast %6 : vector<1x32xf32> to vector<256x32xf32>
    %8 = arith.mulf %0, %7 : vector<256x32xf32>
    %9 = arith.addf %8, %5 : vector<256x32xf32>
    %c0_8 = arith.constant 0 : index
    %c0_9 = arith.constant 0 : index
    %10 = vector.load %arg5[%c0_8, %c0_9] : memref<256x32xf32, #tpu.memory_space<vmem>>, vector<256x32xf32>
    tpu.vector_store %arg5[%c0_8, %c0_9], %9 {strides = array<i32>} : memref<256x32xf32, #tpu.memory_space<vmem>>, vector<256x32xf32>,
    return
  }
  func.func @transform_0(%arg0: i32) -> (i32, i32) {
    %c0_i32 = arith.constant 0 : i32
    %c0_i32_0 = arith.constant 0 : i32
    %c0_i32_1 = arith.constant 0 : i32
    return %c0_i32, %c0_i32_0 : i32, i32
  }
  func.func @transform_1(%arg0: i32) -> (i32, i32) {
    %c0_i32 = arith.constant 0 : i32
    %c0_i32_0 = arith.constant 0 : i32
    %c0_i32_1 = arith.constant 0 : i32
    return %c0_i32, %c0_i32_0 : i32, i32
  }
  func.func @transform_2(%arg0: i32) -> (i32, i32) {
    %c0_i32 = arith.constant 0 : i32
    %c0_i32_0 = arith.constant 0 : i32
    %c0_i32_1 = arith.constant 0 : i32
    return %c0_i32, %c0_i32_0 : i32, i32
  }
  func.func @transform_3(%arg0: i32) -> (i32, i32) {
    %c0_i32 = arith.constant 0 : i32
    %c0_i32_0 = arith.constant 0 : i32
    %c0_i32_1 = arith.constant 0 : i32
    return %c0_i32, %c0_i32_0 : i32, i32
  }
  func.func @transform_4(%arg0: i32) -> (i32, i32) {
    %c0_i32 = arith.constant 0 : i32
    %c0_i32_0 = arith.constant 0 : i32
    %c0_i32_1 = arith.constant 0 : i32
    return %c0_i32, %c0_i32_0 : i32, i32
  }
}

</mosaic_0001>

<llo_original>
// kernel: tpu_custom_call.1
$region0: #{tpu_custom_call.1}
  #allocation0 [shape = 'u32[]', space=smem, size = 0x4, offset = 0x4, fixed_abs, tag = 'smem constant byte address 0x4 - core index']
  #allocation1 [shape = 'u32[72,128]{1,0:T(1,128)}', space=vmem, size = 0x9000, scoped, tag = 'internal scratch']
  %s0 = inlined_call_operand.vmem [shape: f32[256,32], index: 0, kind: input, shape index: {}]
  %s1 = inlined_call_operand.vmem [shape: f32[256,16], index: 1, kind: input, shape index: {}]
  %s2 = inlined_call_operand.vmem [shape: f32[16,32], index: 2, kind: input, shape index: {}]
  %s3 = inlined_call_operand.vmem [shape: f32[1,32], index: 3, kind: input, shape index: {}]
  %s4 = inlined_call_operand.vmem [shape: f32[256,32], index: 4, kind: output, shape index: {}]
  %s5 = sld [smem:[#allocation0]]
  $region26: #{tpu_custom_call.1} parent=0
    _
  %s7 = ssub.s32 1, %s5
  %s8 = scalar_select 0, %s7, %s5
  // Predicated region
  $region2: #{tpu_custom_call.1} parent=0 // pred_check
    _
  $region3: #{tpu_custom_call.1} parent=0 // pred_check_branch
    %10 = sbr.rel (0) target = $region5
  $region4: #{tpu_custom_call.1} parent=0 // pred_region
    _
  $region5: #{tpu_custom_call.1} parent=0 // pred_fallthru
    _
  // Predicated region
  $region6: #{tpu_custom_call.1} parent=0 // pred_check
    _
  $region7: #{tpu_custom_call.1} parent=0 // pred_check_branch
    %12 = sbr.rel (0) target = $region9
  $region8: #{tpu_custom_call.1} parent=0 // pred_region
    _
  $region9: #{tpu_custom_call.1} parent=0 // pred_fallthru
    _
  // Predicated region
  $region10: #{tpu_custom_call.1} parent=0 // pred_check
    _
  $region11: #{tpu_custom_call.1} parent=0 // pred_check_branch
    %14 = sbr.rel (0) target = $region13
  $region12: #{tpu_custom_call.1} parent=0 // pred_region
    _
  $region13: #{tpu_custom_call.1} parent=0 // pred_fallthru
    _
  // Predicated region
  $region14: #{tpu_custom_call.1} parent=0 // pred_check
    _
  $region15: #{tpu_custom_call.1} parent=0 // pred_check_branch
    %16 = sbr.rel (0) target = $region17
  $region16: #{tpu_custom_call.1} parent=0 // pred_region
    _
  $region17: #{tpu_custom_call.1} parent=0 // pred_fallthru
    _
  %v17 = vld [vmem:[%s0] sm:$0xff]
  %v18 = vld [vmem:[%s0 + $0x8] sm:$0xff]
  %v19 = vld [vmem:[%s0 + $0x10] sm:$0xff]
  %v20 = vld [vmem:[%s0 + $0x18] sm:$0xff]
  %v21 = vld [vmem:[%s0 + $0x20] sm:$0xff]
  %v22 = vld [vmem:[%s0 + $0x28] sm:$0xff]
  %v23 = vld [vmem:[%s0 + $0x30] sm:$0xff]
  %v24 = vld [vmem:[%s0 + $0x38] sm:$0xff]
  %v25 = vld [vmem:[%s0 + $0x40] sm:$0xff]
  %v26 = vld [vmem:[%s0 + $0x48] sm:$0xff]
  %v27 = vld [vmem:[%s0 + $0x50] sm:$0xff]
  %v28 = vld [vmem:[%s0 + $0x58] sm:$0xff]
  %v29 = vld [vmem:[%s0 + $0x60] sm:$0xff]
  %v30 = vld [vmem:[%s0 + $0x68] sm:$0xff]
  %v31 = vld [vmem:[%s0 + $0x70] sm:$0xff]
  %v32 = vld [vmem:[%s0 + $0x78] sm:$0xff]
  %v33 = vld [vmem:[%s0 + $0x80] sm:$0xff]
  %v34 = vld [vmem:[%s0 + $0x88] sm:$0xff]
  %v35 = vld [vmem:[%s0 + $0x90] sm:$0xff]
  %v36 = vld [vmem:[%s0 + $0x98] sm:$0xff]
  %v37 = vld [vmem:[%s0 + $0xa0] sm:$0xff]
  %v38 = vld [vmem:[%s0 + $0xa8] sm:$0xff]
  %v39 = vld [vmem:[%s0 + $0xb0] sm:$0xff]
  %v40 = vld [vmem:[%s0 + $0xb8] sm:$0xff]
  %v41 = vld [vmem:[%s0 + $0xc0] sm:$0xff]
  %v42 = vld [vmem:[%s0 + $0xc8] sm:$0xff]
  %v43 = vld [vmem:[%s0 + $0xd0] sm:$0xff]
  %v44 = vld [vmem:[%s0 + $0xd8] sm:$0xff]
  %v45 = vld [vmem:[%s0 + $0xe0] sm:$0xff]
  %v46 = vld [vmem:[%s0 + $0xe8] sm:$0xff]
  %v47 = vld [vmem:[%s0 + $0xf0] sm:$0xff]
  %v48 = vld [vmem:[%s0 + $0xf8] sm:$0xff]
  %v49 = vld [vmem:[%s1] sm:$0xff]
  %v50 = vld [vmem:[%s1 + $0x8] sm:$0xff]
  %v51 = vld [vmem:[%s1 + $0x10] sm:$0xff]
  %v52 = vld [vmem:[%s1 + $0x18] sm:$0xff]
  %v53 = vld [vmem:[%s1 + $0x20] sm:$0xff]
  %v54 = vld [vmem:[%s1 + $0x28] sm:$0xff]
  %v55 = vld [vmem:[%s1 + $0x30] sm:$0xff]
  %v56 = vld [vmem:[%s1 + $0x38] sm:$0xff]
  %v57 = vld [vmem:[%s1 + $0x40] sm:$0xff]
  %v58 = vld [vmem:[%s1 + $0x48] sm:$0xff]
  %v59 = vld [vmem:[%s1 + $0x50] sm:$0xff]
  %v60 = vld [vmem:[%s1 + $0x58] sm:$0xff]
  %v61 = vld [vmem:[%s1 + $0x60] sm:$0xff]
  %v62 = vld [vmem:[%s1 + $0x68] sm:$0xff]
  %v63 = vld [vmem:[%s1 + $0x70] sm:$0xff]
  %v64 = vld [vmem:[%s1 + $0x78] sm:$0xff]
  %v65 = vld [vmem:[%s1 + $0x80] sm:$0xff]
  %v66 = vld [vmem:[%s1 + $0x88] sm:$0xff]
  %v67 = vld [vmem:[%s1 + $0x90] sm:$0xff]
  %v68 = vld [vmem:[%s1 + $0x98] sm:$0xff]
  %v69 = vld [vmem:[%s1 + $0xa0] sm:$0xff]
  %v70 = vld [vmem:[%s1 + $0xa8] sm:$0xff]
  %v71 = vld [vmem:[%s1 + $0xb0] sm:$0xff]
  %v72 = vld [vmem:[%s1 + $0xb8] sm:$0xff]
  %v73 = vld [vmem:[%s1 + $0xc0] sm:$0xff]
  %v74 = vld [vmem:[%s1 + $0xc8] sm:$0xff]
  %v75 = vld [vmem:[%s1 + $0xd0] sm:$0xff]
  %v76 = vld [vmem:[%s1 + $0xd8] sm:$0xff]
  %v77 = vld [vmem:[%s1 + $0xe0] sm:$0xff]
  %v78 = vld [vmem:[%s1 + $0xe8] sm:$0xff]
  %v79 = vld [vmem:[%s1 + $0xf0] sm:$0xff]
  %v80 = vld [vmem:[%s1 + $0xf8] sm:$0xff]
  %81 = vxpose.xlu0.b32.start [1/16] %v49, 128
  %82 = vxpose.xlu0.b32.cont [2/16] %v50, 128
  %83 = vxpose.xlu0.b32.cont [3/16] %v51, 128
  %84 = vxpose.xlu0.b32.cont [4/16] %v52, 128
  %85 = vxpose.xlu0.b32.cont [5/16] %v53, 128
  %86 = vxpose.xlu0.b32.cont [6/16] %v54, 128
  %87 = vxpose.xlu0.b32.cont [7/16] %v55, 128
  %88 = vxpose.xlu0.b32.cont [8/16] %v56, 128
  %89 = vxpose.xlu0.b32.cont [9/16] %v57, 128
  %90 = vxpose.xlu0.b32.cont [10/16] %v58, 128
  %91 = vxpose.xlu0.b32.cont [11/16] %v59, 128
  %92 = vxpose.xlu0.b32.cont [12/16] %v60, 128
  %93 = vxpose.xlu0.b32.cont [13/16] %v61, 128
  %94 = vxpose.xlu0.b32.cont [14/16] %v62, 128
  %95 = vxpose.xlu0.b32.cont [15/16] %v63, 128
  %96 = vxpose.xlu0.b32.end [16/16] %v64, 128
  %v97 = vpop.trf.xlu0
  %v98 = vpop.trf.xlu0
  %v99 = vpop.trf.xlu0
  %v100 = vpop.trf.xlu0
  %v101 = vpop.trf.xlu0
  %v102 = vpop.trf.xlu0
  %v103 = vpop.trf.xlu0
  %v104 = vpop.trf.xlu0
  %v105 = vpop.trf.xlu0
  %v106 = vpop.trf.xlu0
  %v107 = vpop.trf.xlu0
  %v108 = vpop.trf.xlu0
  %v109 = vpop.trf.xlu0
  %v110 = vpop.trf.xlu0
  %v111 = vpop.trf.xlu0
  %v112 = vpop.trf.xlu0
  %113 = vxpose.xlu0.b32.start [1/16] %v65, 128
  %114 = vxpose.xlu0.b32.cont [2/16] %v66, 128
  %115 = vxpose.xlu0.b32.cont [3/16] %v67, 128
  %116 = vxpose.xlu0.b32.cont [4/16] %v68, 128
  %117 = vxpose.xlu0.b32.cont [5/16] %v69, 128
  %118 = vxpose.xlu0.b32.cont [6/16] %v70, 128
  %119 = vxpose.xlu0.b32.cont [7/16] %v71, 128
  %120 = vxpose.xlu0.b32.cont [8/16] %v72, 128
  %121 = vxpose.xlu0.b32.cont [9/16] %v73, 128
  %122 = vxpose.xlu0.b32.cont [10/16] %v74, 128
  %123 = vxpose.xlu0.b32.cont [11/16] %v75, 128
  %124 = vxpose.xlu0.b32.cont [12/16] %v76, 128
  %125 = vxpose.xlu0.b32.cont [13/16] %v77, 128
  %126 = vxpose.xlu0.b32.cont [14/16] %v78, 128
  %127 = vxpose.xlu0.b32.cont [15/16] %v79, 128
  %128 = vxpose.xlu0.b32.end [16/16] %v80, 128
  %v129 = vpop.trf.xlu0
  %v130 = vpop.trf.xlu0
  %v131 = vpop.trf.xlu0
  %v132 = vpop.trf.xlu0
  %v133 = vpop.trf.xlu0
  %v134 = vpop.trf.xlu0
  %v135 = vpop.trf.xlu0
  %v136 = vpop.trf.xlu0
  %v137 = vpop.trf.xlu0
  %v138 = vpop.trf.xlu0
  %v139 = vpop.trf.xlu0
  %v140 = vpop.trf.xlu0
  %v141 = vpop.trf.xlu0
  %v142 = vpop.trf.xlu0
  %v143 = vpop.trf.xlu0
  %v144 = vpop.trf.xlu0
  %145 = vmatpush.msra.mxu0 %v32
  %146 = vmatpush.msra.mxu0 %v31
  %147 = vmatpush.msra.mxu0 %v30
  %148 = vmatpush.msra.mxu0 %v29
  %149 = vmatpush.msra.mxu0 %v28
  %150 = vmatpush.msra.mxu0 %v27
  %151 = vmatpush.msra.mxu0 %v26
  %152 = vmatpush.msra.mxu0 %v25
  %153 = vmatpush.msra.mxu0 %v24
  %154 = vmatpush.msra.mxu0 %v23
  %155 = vmatpush.msra.mxu0 %v22
  %156 = vmatpush.msra.mxu0 %v21
  %157 = vmatpush.msra.mxu0 %v20
  %158 = vmatpush.msra.mxu0 %v19
  %159 = vmatpush.msra.mxu0 %v18
  %160 = vmatpush.msra.mxu0 %v17
  %161 = vmatmul.f32.gmra.mxu0 %v97
  %v162 = vpop.f32.mrf.mxu0
  %v163 = vadd.f32 0.0, %v162
  %164 = vmatmul.f32.gmra.mxu0 %v98
  %v165 = vpop.f32.mrf.mxu0
  %v166 = vadd.f32 0.0, %v165
  %167 = vdwg.mxu0
  %168 = vmatpush.msra.mxu0 %v48
  %169 = vmatpush.msra.mxu0 %v47
  %170 = vmatpush.msra.mxu0 %v46
  %171 = vmatpush.msra.mxu0 %v45
  %172 = vmatpush.msra.mxu0 %v44
  %173 = vmatpush.msra.mxu0 %v43
  %174 = vmatpush.msra.mxu0 %v42
  %175 = vmatpush.msra.mxu0 %v41
  %176 = vmatpush.msra.mxu0 %v40
  %177 = vmatpush.msra.mxu0 %v39
  %178 = vmatpush.msra.mxu0 %v38
  %179 = vmatpush.msra.mxu0 %v37
  %180 = vmatpush.msra.mxu0 %v36
  %181 = vmatpush.msra.mxu0 %v35
  %182 = vmatpush.msra.mxu0 %v34
  %183 = vmatpush.msra.mxu0 %v33
  %184 = vmatmul.f32.gmra.mxu0 %v129
  %v185 = vpop.f32.mrf.mxu0
  %v186 = vadd.f32 %v163, %v185
  %187 = vmatmul.f32.gmra.mxu0 %v130
  %v188 = vpop.f32.mrf.mxu0
  %v189 = vadd.f32 %v166, %v188
  %190 = vdwg.mxu0
  %v191 = vld [vmem:[%s2] sm:$0xff]
  %v192 = vld [vmem:[%s2 + $0x8] sm:$0xff]
  %v193 = vmul.f32 %v186, %v191
  %v194 = vmul.f32 %v189, %v192
  %vm195 = vcmask 130048
  %v197 = vsel %vm195, %v49, 0
  %v200 = vsel %vm195, %v50, 0
  %v203 = vsel %vm195, %v51, 0
  %v206 = vsel %vm195, %v52, 0
  %v209 = vsel %vm195, %v53, 0
  %v212 = vsel %vm195, %v54, 0
  %v215 = vsel %vm195, %v55, 0
  %v218 = vsel %vm195, %v56, 0
  %v221 = vsel %vm195, %v57, 0
  %v224 = vsel %vm195, %v58, 0
  %v227 = vsel %vm195, %v59, 0
  %v230 = vsel %vm195, %v60, 0
  %v233 = vsel %vm195, %v61, 0
  %v236 = vsel %vm195, %v62, 0
  %v239 = vsel %vm195, %v63, 0
  %v242 = vsel %vm195, %v64, 0
  %v245 = vsel %vm195, %v65, 0
  %v248 = vsel %vm195, %v66, 0
  %v251 = vsel %vm195, %v67, 0
  %v254 = vsel %vm195, %v68, 0
  %v257 = vsel %vm195, %v69, 0
  %v260 = vsel %vm195, %v70, 0
  %v263 = vsel %vm195, %v71, 0
  %v266 = vsel %vm195, %v72, 0
  %v269 = vsel %vm195, %v73, 0
  %v272 = vsel %vm195, %v74, 0
  %v275 = vsel %vm195, %v75, 0
  %v278 = vsel %vm195, %v76, 0
  %v281 = vsel %vm195, %v77, 0
  %v284 = vsel %vm195, %v78, 0
  %v287 = vsel %vm195, %v79, 0
  %v290 = vsel %vm195, %v80, 0
  %292 = vmatpush.msra.mxu0 0.0
  %293 = vmatpush.msra.mxu0 0.0
  %294 = vmatpush.msra.mxu0 0.0
  %295 = vmatpush.msra.mxu0 0.0
  %296 = vmatpush.msra.mxu0 0.0
  %297 = vmatpush.msra.mxu0 0.0
  %298 = vmatpush.msra.mxu0 0.0
  %299 = vmatpush.msra.mxu0 0.0
  %300 = vmatpush.msra.mxu0 0.0
  %301 = vmatpush.msra.mxu0 0.0
  %302 = vmatpush.msra.mxu0 0.0
  %303 = vmatpush.msra.mxu0 0.0
  %304 = vmatpush.msra.mxu0 0.0
  %305 = vmatpush.msra.mxu0 0.0
  %306 = vmatpush.msra.mxu0 %v194
  %307 = vmatpush.msra.mxu0 %v193
  %308 = vmatmul.f32.gmra.mxu0 %v197
  %v309 = vpop.f32.mrf.mxu0
  %v310 = vadd.f32 0.0, %v309
  %311 = vmatmul.f32.gmra.mxu0 %v200
  %v312 = vpop.f32.mrf.mxu0
  %v313 = vadd.f32 0.0, %v312
  %314 = vmatmul.f32.gmra.mxu0 %v203
  %v315 = vpop.f32.mrf.mxu0
  %v316 = vadd.f32 0.0, %v315
  %317 = vmatmul.f32.gmra.mxu0 %v206
  %v318 = vpop.f32.mrf.mxu0
  %v319 = vadd.f32 0.0, %v318
  %320 = vmatmul.f32.gmra.mxu0 %v209
  %v321 = vpop.f32.mrf.mxu0
  %v322 = vadd.f32 0.0, %v321
  %323 = vmatmul.f32.gmra.mxu0 %v212
  %v324 = vpop.f32.mrf.mxu0
  %v325 = vadd.f32 0.0, %v324
  %326 = vmatmul.f32.gmra.mxu0 %v215
  %v327 = vpop.f32.mrf.mxu0
  %v328 = vadd.f32 0.0, %v327
  %329 = vmatmul.f32.gmra.mxu0 %v218
  %v330 = vpop.f32.mrf.mxu0
  %v331 = vadd.f32 0.0, %v330
  %332 = vmatmul.f32.gmra.mxu0 %v221
  %v333 = vpop.f32.mrf.mxu0
  %v334 = vadd.f32 0.0, %v333
  %335 = vmatmul.f32.gmra.mxu0 %v224
  %v336 = vpop.f32.mrf.mxu0
  %v337 = vadd.f32 0.0, %v336
  %338 = vmatmul.f32.gmra.mxu0 %v227
  %v339 = vpop.f32.mrf.mxu0
  %v340 = vadd.f32 0.0, %v339
  %341 = vmatmul.f32.gmra.mxu0 %v230
  %v342 = vpop.f32.mrf.mxu0
  %v343 = vadd.f32 0.0, %v342
  %344 = vmatmul.f32.gmra.mxu0 %v233
  %v345 = vpop.f32.mrf.mxu0
  %v346 = vadd.f32 0.0, %v345
  %347 = vmatmul.f32.gmra.mxu0 %v236
  %v348 = vpop.f32.mrf.mxu0
  %v349 = vadd.f32 0.0, %v348
  %350 = vmatmul.f32.gmra.mxu0 %v239
  %v351 = vpop.f32.mrf.mxu0
  %v352 = vadd.f32 0.0, %v351
  %353 = vmatmul.f32.gmra.mxu0 %v242
  %v354 = vpop.f32.mrf.mxu0
  %v355 = vadd.f32 0.0, %v354
  %356 = vmatmul.f32.gmra.mxu0 %v245
  %v357 = vpop.f32.mrf.mxu0
  %v358 = vadd.f32 0.0, %v357
  %359 = vmatmul.f32.gmra.mxu0 %v248
  %v360 = vpop.f32.mrf.mxu0
  %v361 = vadd.f32 0.0, %v360
  %362 = vmatmul.f32.gmra.mxu0 %v251
  %v363 = vpop.f32.mrf.mxu0
  %v364 = vadd.f32 0.0, %v363
  %365 = vmatmul.f32.gmra.mxu0 %v254
  %v366 = vpop.f32.mrf.mxu0
  %v367 = vadd.f32 0.0, %v366
  %368 = vmatmul.f32.gmra.mxu0 %v257
  %v369 = vpop.f32.mrf.mxu0
  %v370 = vadd.f32 0.0, %v369
  %371 = vmatmul.f32.gmra.mxu0 %v260
  %v372 = vpop.f32.mrf.mxu0
  %v373 = vadd.f32 0.0, %v372
  %374 = vmatmul.f32.gmra.mxu0 %v263
  %v375 = vpop.f32.mrf.mxu0
  %v376 = vadd.f32 0.0, %v375
  %377 = vmatmul.f32.gmra.mxu0 %v266
  %v378 = vpop.f32.mrf.mxu0
  %v379 = vadd.f32 0.0, %v378
  %380 = vmatmul.f32.gmra.mxu0 %v269
  %v381 = vpop.f32.mrf.mxu0
  %v382 = vadd.f32 0.0, %v381
  %383 = vmatmul.f32.gmra.mxu0 %v272
  %v384 = vpop.f32.mrf.mxu0
  %v385 = vadd.f32 0.0, %v384
  %386 = vmatmul.f32.gmra.mxu0 %v275
  %v387 = vpop.f32.mrf.mxu0
  %v388 = vadd.f32 0.0, %v387
  %389 = vmatmul.f32.gmra.mxu0 %v278
  %v390 = vpop.f32.mrf.mxu0
  %v391 = vadd.f32 0.0, %v390
  %392 = vmatmul.f32.gmra.mxu0 %v281
  %v393 = vpop.f32.mrf.mxu0
  %v394 = vadd.f32 0.0, %v393
  %395 = vmatmul.f32.gmra.mxu0 %v284
  %v396 = vpop.f32.mrf.mxu0
  %v397 = vadd.f32 0.0, %v396
  %398 = vmatmul.f32.gmra.mxu0 %v287
  %v399 = vpop.f32.mrf.mxu0
  %v400 = vadd.f32 0.0, %v399
  %401 = vmatmul.f32.gmra.mxu0 %v290
  %v402 = vpop.f32.mrf.mxu0
  %v403 = vadd.f32 0.0, %v402
  %404 = vdwg.mxu0
  %v405 = vld [vmem:[%s3] sm:$0x1]
  %v407 = vperm.slane %v405, 0
  %v409 = vmul.f32 %v17, %v407
  %v410 = vmul.f32 %v18, %v407
  %v411 = vmul.f32 %v19, %v407
  %v412 = vmul.f32 %v20, %v407
  %v413 = vmul.f32 %v21, %v407
  %v414 = vmul.f32 %v22, %v407
  %v415 = vmul.f32 %v23, %v407
  %v416 = vmul.f32 %v24, %v407
  %v417 = vmul.f32 %v25, %v407
  %v418 = vmul.f32 %v26, %v407
  %v419 = vmul.f32 %v27, %v407
  %v420 = vmul.f32 %v28, %v407
  %v421 = vmul.f32 %v29, %v407
  %v422 = vmul.f32 %v30, %v407
  %v423 = vmul.f32 %v31, %v407
  %v424 = vmul.f32 %v32, %v407
  %v425 = vmul.f32 %v33, %v407
  %v426 = vmul.f32 %v34, %v407
  %v427 = vmul.f32 %v35, %v407
  %v428 = vmul.f32 %v36, %v407
  %v429 = vmul.f32 %v37, %v407
  %v430 = vmul.f32 %v38, %v407
  %v431 = vmul.f32 %v39, %v407
  %v432 = vmul.f32 %v40, %v407
  %v433 = vmul.f32 %v41, %v407
  %v434 = vmul.f32 %v42, %v407
  %v435 = vmul.f32 %v43, %v407
  %v436 = vmul.f32 %v44, %v407
  %v437 = vmul.f32 %v45, %v407
  %v438 = vmul.f32 %v46, %v407
  %v439 = vmul.f32 %v47, %v407
  %v440 = vmul.f32 %v48, %v407
  %v441 = vadd.f32 %v409, %v310
  %v442 = vadd.f32 %v410, %v313
  %v443 = vadd.f32 %v411, %v316
  %v444 = vadd.f32 %v412, %v319
  %v445 = vadd.f32 %v413, %v322
  %v446 = vadd.f32 %v414, %v325
  %v447 = vadd.f32 %v415, %v328
  %v448 = vadd.f32 %v416, %v331
  %v449 = vadd.f32 %v417, %v334
  %v450 = vadd.f32 %v418, %v337
  %v451 = vadd.f32 %v419, %v340
  %v452 = vadd.f32 %v420, %v343
  %v453 = vadd.f32 %v421, %v346
  %v454 = vadd.f32 %v422, %v349
  %v455 = vadd.f32 %v423, %v352
  %v456 = vadd.f32 %v424, %v355
  %v457 = vadd.f32 %v425, %v358
  %v458 = vadd.f32 %v426, %v361
  %v459 = vadd.f32 %v427, %v364
  %v460 = vadd.f32 %v428, %v367
  %v461 = vadd.f32 %v429, %v370
  %v462 = vadd.f32 %v430, %v373
  %v463 = vadd.f32 %v431, %v376
  %v464 = vadd.f32 %v432, %v379
  %v465 = vadd.f32 %v433, %v382
  %v466 = vadd.f32 %v434, %v385
  %v467 = vadd.f32 %v435, %v388
  %v468 = vadd.f32 %v436, %v391
  %v469 = vadd.f32 %v437, %v394
  %v470 = vadd.f32 %v438, %v397
  %v471 = vadd.f32 %v439, %v400
  %v472 = vadd.f32 %v440, %v403
  %vm473 = vcmask 261120
  %474 = vst.msk [vmem:[%s4] sm:$0xff] %vm473, %v441
  %475 = vst.msk [vmem:[%s4 + $0x8] sm:$0xff] %vm473, %v442
  %476 = vst.msk [vmem:[%s4 + $0x10] sm:$0xff] %vm473, %v443
  %477 = vst.msk [vmem:[%s4 + $0x18] sm:$0xff] %vm473, %v444
  %478 = vst.msk [vmem:[%s4 + $0x20] sm:$0xff] %vm473, %v445
  %479 = vst.msk [vmem:[%s4 + $0x28] sm:$0xff] %vm473, %v446
  %480 = vst.msk [vmem:[%s4 + $0x30] sm:$0xff] %vm473, %v447
  %481 = vst.msk [vmem:[%s4 + $0x38] sm:$0xff] %vm473, %v448
  %482 = vst.msk [vmem:[%s4 + $0x40] sm:$0xff] %vm473, %v449
  %483 = vst.msk [vmem:[%s4 + $0x48] sm:$0xff] %vm473, %v450
  %484 = vst.msk [vmem:[%s4 + $0x50] sm:$0xff] %vm473, %v451
  %485 = vst.msk [vmem:[%s4 + $0x58] sm:$0xff] %vm473, %v452
  %486 = vst.msk [vmem:[%s4 + $0x60] sm:$0xff] %vm473, %v453
  %487 = vst.msk [vmem:[%s4 + $0x68] sm:$0xff] %vm473, %v454
  %488 = vst.msk [vmem:[%s4 + $0x70] sm:$0xff] %vm473, %v455
  %489 = vst.msk [vmem:[%s4 + $0x78] sm:$0xff] %vm473, %v456
  %490 = vst.msk [vmem:[%s4 + $0x80] sm:$0xff] %vm473, %v457
  %491 = vst.msk [vmem:[%s4 + $0x88] sm:$0xff] %vm473, %v458
  %492 = vst.msk [vmem:[%s4 + $0x90] sm:$0xff] %vm473, %v459
  %493 = vst.msk [vmem:[%s4 + $0x98] sm:$0xff] %vm473, %v460
  %494 = vst.msk [vmem:[%s4 + $0xa0] sm:$0xff] %vm473, %v461
  %495 = vst.msk [vmem:[%s4 + $0xa8] sm:$0xff] %vm473, %v462
  %496 = vst.msk [vmem:[%s4 + $0xb0] sm:$0xff] %vm473, %v463
  %497 = vst.msk [vmem:[%s4 + $0xb8] sm:$0xff] %vm473, %v464
  %498 = vst.msk [vmem:[%s4 + $0xc0] sm:$0xff] %vm473, %v465
  %499 = vst.msk [vmem:[%s4 + $0xc8] sm:$0xff] %vm473, %v466
  %500 = vst.msk [vmem:[%s4 + $0xd0] sm:$0xff] %vm473, %v467
  %501 = vst.msk [vmem:[%s4 + $0xd8] sm:$0xff] %vm473, %v468
  %502 = vst.msk [vmem:[%s4 + $0xe0] sm:$0xff] %vm473, %v469
  %503 = vst.msk [vmem:[%s4 + $0xe8] sm:$0xff] %vm473, %v470
  %504 = vst.msk [vmem:[%s4 + $0xf0] sm:$0xff] %vm473, %v471
  %505 = vst.msk [vmem:[%s4 + $0xf8] sm:$0xff] %vm473, %v472
  // Predicated region
  $region18: #{tpu_custom_call.1} parent=0 // pred_check
    _
  $region19: #{tpu_custom_call.1} parent=0 // pred_check_branch
    %507 = sbr.rel (0) target = $region21
  $region20: #{tpu_custom_call.1} parent=0 // pred_region
    _
  $region21: #{tpu_custom_call.1} parent=0 // pred_fallthru
    _
  // Predicated region
  $region22: #{tpu_custom_call.1} parent=0 // pred_check
    _
  $region23: #{tpu_custom_call.1} parent=0 // pred_check_branch
    %509 = sbr.rel (0) target = $region25
  $region24: #{tpu_custom_call.1} parent=0 // pred_region
    _
  $region25: #{tpu_custom_call.1} parent=0 // pred_fallthru
    _

</llo_original>
